<compile_context>
chip_gen: v6e
topology: v6e:2x2x1
jax: 0.10.0
libtpu: 0.0.40
codegen_flags: <defaults>
</compile_context>

<pallas_src>
import functools

import jax
import jax.numpy as jnp
from jax.experimental import pallas as pl
from jax.experimental.pallas import tpu as pltpu


# ----------------------------- config ---------------------------------------
CONFIG = {
    "loss_feat_alpha": 0.1,
    "loss_score_alpha": 0.1,
    "loss_margin": 0.5,
    "loss_sparse": 0.01,
    "loss_smooth": 0.001,
    "class_reweights": (0.6, 0.4),
    "label_smoothing": 0.1,
}
EPS = 1e-8


# --------------------------- kernel helpers ----------------------------------
def _sum2d(x):
    # (R, C) -> (1, 1), fully vectorized (no rank-0 intermediates)
    return jnp.sum(jnp.sum(x, axis=0, keepdims=True), axis=1, keepdims=True)


# ------------------------------- kernel --------------------------------------
def total_loss_kernel(
    p_score_ref, label_ref, tk_ref, feats_ref,
    out_ref,
    *, bs, tkB, fB, fN, fM,
    w0, w1, label_smoothing, eps,
    margin, feat_alpha, score_alpha, loss_sparse, loss_smooth,
):
    # ---- fused weighted BCE (label smoothing == clip) + sparsity, one pass ----
    s = p_score_ref[...]                                   # (2*bs, T)
    rows, T = s.shape
    t = jnp.clip(label_ref[...], label_smoothing, 1.0 - label_smoothing)
    bce = (-w0 * t * jnp.log(s + eps)
           - w1 * (1.0 - t) * jnp.log(1.0 - s + eps))
    c_cls = 1.0 / float(rows * T)                          # mean over all of bce
    c_sparse = loss_sparse / float(bs * T)                 # weighted mean of abn half
    row_idx = jax.lax.broadcasted_iota(jnp.int32, (rows, T), 0)
    acc = c_cls * bce + jnp.where(row_idx >= bs, c_sparse * s, 0.0)
    partial = _sum2d(acc)                                  # (1,1): cls + sparsity

    # ---- temporal smoothness on abnormal half (last-row diff is 0 in ref) ----
    if bs > 1:
        abn = s[bs:, :]                                    # (bs, T)
        d = abn[1:, :] - abn[:-1, :]
        partial = partial + loss_smooth * _sum2d(d * d)

    # ---- topK abnormal-score gap: single reduction over the stacked diff ----
    tk = tk_ref[...]                                       # (2*tkB, K)
    dk = tk[tkB:, :] - tk[:tkB, :]                         # abn - nor, same shape
    mean_gap = _sum2d(dk) / float(dk.shape[0] * dk.shape[1])
    loss_gap = jnp.maximum(1.0 - mean_gap, 0.0)            # relu

    # ---- feature-similarity margin loss (MXU-free, factorized) ----
    # mean_{b,n}[ mean_m <a_hat,n_hat> - mean_m <a_hat,ab_hat> ]
    #   = sum_{b,n,d} a_hat[b,n,d] * (sum_m (n_hat - ab_hat)[b,m,d]) / (B*N*M)
    f = feats_ref[...]                                     # (3*fB, fN, D)
    f_hat = f * jax.lax.rsqrt(jnp.sum(f * f, axis=2, keepdims=True))
    a_hat = f_hat[:fB]                                     # abn_feat_conf_nor (anchor)
    n_hat = f_hat[fB:2 * fB]                               # nor_feat_conf_nor
    ab_hat = f_hat[2 * fB:]                                # abn_feat_conf_abn
    C3 = jnp.sum(n_hat - ab_hat, axis=1, keepdims=True)    # (fB, 1, D)
    prod = a_hat * C3                                      # (fB, fN, D) broadcast mul
    feat_sum = jnp.sum(
        jnp.sum(jnp.sum(prod, axis=2, keepdims=True), axis=1, keepdims=True),
        axis=0, keepdims=True)                             # (1,1,1)
    feat_mean = feat_sum[0] / float(fB * fN * fM)          # (1,1)
    loss_feat = jnp.abs(margin - feat_mean)

    # ---- total ----
    out_ref[...] = partial + score_alpha * loss_gap + feat_alpha * loss_feat


# ------------------------------ wrapper ---------------------------------------
def total_loss(p_score, p_label, label, abn_score_topK_nor, abn_score_topK_abn,
               nor_feat_conf_nor, abn_feat_conf_nor, abn_feat_conf_abn,
               config=CONFIG):
    # p_label accepted but unused, mirroring the PyTorch forward signature.
    del p_label
    bs = p_score.shape[0] // 2
    tkB = abn_score_topK_nor.shape[0]
    fB, fN, _ = abn_feat_conf_nor.shape
    fM = nor_feat_conf_nor.shape[1]

    # Pack inputs in HBM (cheap XLA concat) -> 4 DMAs instead of 7.
    tk = jnp.concatenate([abn_score_topK_nor, abn_score_topK_abn], axis=0)
    feats = jnp.concatenate(
        [abn_feat_conf_nor, nor_feat_conf_nor, abn_feat_conf_abn], axis=0)

    kernel = functools.partial(
        total_loss_kernel,
        bs=bs, tkB=tkB, fB=fB, fN=fN, fM=fM,
        w0=float(config["class_reweights"][0]),
        w1=float(config["class_reweights"][1]),
        label_smoothing=float(config["label_smoothing"]),
        eps=EPS,
        margin=float(config["loss_margin"]),
        feat_alpha=float(config["loss_feat_alpha"]),
        score_alpha=float(config["loss_score_alpha"]),
        loss_sparse=float(config["loss_sparse"]),
        loss_smooth=float(config["loss_smooth"]),
    )
    out = pl.pallas_call(
        kernel,
        out_shape=jax.ShapeDtypeStruct((1, 1), jnp.float32),
        in_specs=[pl.BlockSpec(memory_space=pltpu.VMEM)] * 4,
        out_specs=pl.BlockSpec(memory_space=pltpu.VMEM),
    )(p_score, label, tk, feats)
    return out[0, 0]


# --------------------------- pure-JAX reference --------------------------------
def total_loss_ref(p_score, label, tk_nor, tk_abn, nfc_nor, afc_nor, afc_abn,
                   config=CONFIG):
    bs = p_score.shape[0] // 2
    w0, w1 = config["class_reweights"]
    ls = config["label_smoothing"]
    t = jnp.clip(label, ls, 1.0 - ls)
    loss_cls = jnp.mean(-w0 * t * jnp.log(p_score + EPS)
                        - w1 * (1.0 - t) * jnp.log(1.0 - p_score + EPS))
    gap = jax.nn.relu(1.0 - (jnp.mean(tk_abn) - jnp.mean(tk_nor)))

    def nrm(x):
        return x / jnp.linalg.norm(x, axis=2, keepdims=True)

    nor_sim = jnp.einsum("bnd,bmd->bnm", nrm(afc_nor), nrm(nfc_nor))
    abn_sim = jnp.einsum("bnd,bmd->bnm", nrm(afc_nor), nrm(afc_abn))
    loss_feat = jnp.abs(config["loss_margin"]
                        - jnp.mean(jnp.mean(nor_sim, 2) - jnp.mean(abn_sim, 2)))
    abn_scores = p_score[bs:]
    sparse = jnp.mean(abn_scores)
    arr2 = jnp.concatenate([abn_scores[1:], abn_scores[-1:]], axis=0)
    smooth = jnp.sum((arr2 - abn_scores) ** 2)
    return (loss_cls + config["loss_feat_alpha"] * loss_feat
            + config["loss_score_alpha"] * gap
            + config["loss_sparse"] * sparse
            + config["loss_smooth"] * smooth)


# --------------------------------- main ----------------------------------------
if __name__ == "__main__":
    key = jax.random.PRNGKey(0)
    ks = jax.random.split(key, 8)

    bs, T = 2, 16          # p_score: (2*bs, T)
    B, K = 2, 4            # topK scores: (B, K)
    N, D = 8, 32           # features: (B, N, D)

    p_score = jax.nn.sigmoid(jax.random.normal(ks[0], (2 * bs, T), jnp.float32))
    label = jnp.round(jax.random.uniform(ks[1], (2 * bs, T), jnp.float32))
    p_label = jnp.round(jax.random.uniform(ks[2], (2 * bs, T), jnp.float32))  # unused by forward
    tk_nor = jax.nn.sigmoid(jax.random.normal(ks[3], (B, K), jnp.float32))
    tk_abn = jax.nn.sigmoid(jax.random.normal(ks[4], (B, K), jnp.float32))
    nor_feat_conf_nor = jax.random.normal(ks[5], (B, N, D), jnp.float32)
    abn_feat_conf_nor = jax.random.normal(ks[6], (B, N, D), jnp.float32)
    abn_feat_conf_abn = jax.random.normal(ks[7], (B, N, D), jnp.float32)

    out = total_loss(p_score, p_label, label, tk_nor, tk_abn,
                     nor_feat_conf_nor, abn_feat_conf_nor, abn_feat_conf_abn)
    out = jax.block_until_ready(out)

    ref = total_loss_ref(p_score, label, tk_nor, tk_abn,
                         nor_feat_conf_nor, abn_feat_conf_nor, abn_feat_conf_abn)
    assert jnp.allclose(out, ref, rtol=1e-5, atol=1e-5), (out, ref)
    print("KERNEL_OK")
</pallas_src>

<mosaic_0001>
module attributes {stable_mosaic.version = 11 : i64} {
  func.func @total_loss_kernel(%arg0: memref<4x16xf32, #tpu.memory_space<vmem>>, %arg1: memref<4x16xf32, #tpu.memory_space<vmem>>, %arg2: memref<4x4xf32, #tpu.memory_space<vmem>>, %arg3: memref<6x8x32xf32, #tpu.memory_space<vmem>>, %arg4: memref<1x1xf32, #tpu.memory_space<vmem>>) attributes {dimension_semantics = [], scalar_prefetch = 0 : i64, scratch_operands = 0 : i64, tpu.core_type = #tpu.core_type<tc>} {
    %c0 = arith.constant 0 : index
    %c0_0 = arith.constant 0 : index
    %0 = vector.load %arg0[%c0, %c0_0] : memref<4x16xf32, #tpu.memory_space<vmem>>, vector<4x16xf32>
    %c0_1 = arith.constant 0 : index
    %c0_2 = arith.constant 0 : index
    %1 = vector.load %arg1[%c0_1, %c0_2] : memref<4x16xf32, #tpu.memory_space<vmem>>, vector<4x16xf32>
    %cst = arith.constant 1.000000e-01 : f32
    %cst_3 = arith.constant 0.899999976 : f32
    %2 = vector.broadcast %cst : f32 to vector<4x16xf32>
    %3 = arith.maximumf %2, %1 : vector<4x16xf32>
    %4 = vector.broadcast %cst_3 : f32 to vector<4x16xf32>
    %5 = arith.minimumf %4, %3 : vector<4x16xf32>
    %cst_4 = arith.constant -6.000000e-01 : f32
    %6 = vector.broadcast %cst_4 : f32 to vector<4x16xf32>
    %7 = arith.mulf %6, %5 : vector<4x16xf32>
    %cst_5 = arith.constant 9.99999993E-9 : f32
    %8 = vector.broadcast %cst_5 : f32 to vector<4x16xf32>
    %9 = arith.addf %0, %8 : vector<4x16xf32>
    %10 = math.log %9 : vector<4x16xf32>
    %11 = arith.mulf %7, %10 : vector<4x16xf32>
    %cst_6 = arith.constant 1.000000e+00 : f32
    %12 = vector.broadcast %cst_6 : f32 to vector<4x16xf32>
    %13 = arith.subf %12, %5 : vector<4x16xf32>
    %cst_7 = arith.constant 4.000000e-01 : f32
    %14 = vector.broadcast %cst_7 : f32 to vector<4x16xf32>
    %15 = arith.mulf %14, %13 : vector<4x16xf32>
    %cst_8 = arith.constant 1.000000e+00 : f32
    %16 = vector.broadcast %cst_8 : f32 to vector<4x16xf32>
    %17 = arith.subf %16, %0 : vector<4x16xf32>
    %cst_9 = arith.constant 9.99999993E-9 : f32
    %18 = vector.broadcast %cst_9 : f32 to vector<4x16xf32>
    %19 = arith.addf %17, %18 : vector<4x16xf32>
    %20 = math.log %19 : vector<4x16xf32>
    %21 = arith.mulf %15, %20 : vector<4x16xf32>
    %22 = arith.subf %11, %21 : vector<4x16xf32>
    %23 = tpu.iota {dimensions = array<i32: 0>} : vector<4x16xi32>
    %cst_10 = arith.constant 1.562500e-02 : f32
    %24 = vector.broadcast %cst_10 : f32 to vector<4x16xf32>
    %25 = arith.mulf %24, %22 : vector<4x16xf32>
    %c2_i32 = arith.constant 2 : i32
    %26 = vector.broadcast %c2_i32 : i32 to vector<4x16xi32>
    %27 = arith.cmpi sge, %23, %26 : vector<4x16xi32>
    %cst_11 = arith.constant 3.125000e-04 : f32
    %28 = vector.broadcast %cst_11 : f32 to vector<4x16xf32>
    %29 = arith.mulf %28, %0 : vector<4x16xf32>
    %cst_12 = arith.constant 0.000000e+00 : f32
    %30 = vector.broadcast %cst_12 : f32 to vector<4x16xf32>
    %31 = arith.select %27, %29, %30 : vector<4x16xi1>, vector<4x16xf32>
    %32 = arith.addf %25, %31 : vector<4x16xf32>
    %cst_13 = arith.constant dense<0.000000e+00> : vector<16xf32>
    %33 = vector.multi_reduction <add>, %32, %cst_13 [0] : vector<4x16xf32> to vector<16xf32>
    %34 = vector.shape_cast %33 : vector<16xf32> to vector<1x16xf32>
    %cst_14 = arith.constant dense<0.000000e+00> : vector<1xf32>
    %35 = vector.multi_reduction <add>, %34, %cst_14 [1] : vector<1x16xf32> to vector<1xf32>
    %36 = vector.shape_cast %35 : vector<1xf32> to vector<1x1xf32>
    %37 = vector.extract_strided_slice %0 {offsets = [2, 0], sizes = [2, 16], strides = [1, 1]} : vector<4x16xf32> to vector<2x16xf32>
    %38 = vector.extract_strided_slice %37 {offsets = [1, 0], sizes = [1, 16], strides = [1, 1]} : vector<2x16xf32> to vector<1x16xf32>
    %39 = vector.extract_strided_slice %37 {offsets = [0, 0], sizes = [1, 16], strides = [1, 1]} : vector<2x16xf32> to vector<1x16xf32>
    %40 = arith.subf %38, %39 : vector<1x16xf32>
    %41 = arith.mulf %40, %40 : vector<1x16xf32>
    %cst_15 = arith.constant dense<0.000000e+00> : vector<16xf32>
    %42 = vector.multi_reduction <add>, %41, %cst_15 [0] : vector<1x16xf32> to vector<16xf32>
    %43 = vector.shape_cast %42 : vector<16xf32> to vector<1x16xf32>
    %cst_16 = arith.constant dense<0.000000e+00> : vector<1xf32>
    %44 = vector.multi_reduction <add>, %43, %cst_16 [1] : vector<1x16xf32> to vector<1xf32>
    %45 = vector.shape_cast %44 : vector<1xf32> to vector<1x1xf32>
    %cst_17 = arith.constant 1.000000e-03 : f32
    %46 = vector.broadcast %cst_17 : f32 to vector<1x1xf32>
    %47 = arith.mulf %46, %45 : vector<1x1xf32>
    %48 = arith.addf %36, %47 : vector<1x1xf32>
    %c0_18 = arith.constant 0 : index
    %c0_19 = arith.constant 0 : index
    %49 = vector.load %arg2[%c0_18, %c0_19] : memref<4x4xf32, #tpu.memory_space<vmem>>, vector<4x4xf32>
    %50 = vector.extract_strided_slice %49 {offsets = [2, 0], sizes = [2, 4], strides = [1, 1]} : vector<4x4xf32> to vector<2x4xf32>
    %51 = vector.extract_strided_slice %49 {offsets = [0, 0], sizes = [2, 4], strides = [1, 1]} : vector<4x4xf32> to vector<2x4xf32>
    %52 = arith.subf %50, %51 : vector<2x4xf32>
    %cst_20 = arith.constant dense<0.000000e+00> : vector<4xf32>
    %53 = vector.multi_reduction <add>, %52, %cst_20 [0] : vector<2x4xf32> to vector<4xf32>
    %54 = vector.shape_cast %53 : vector<4xf32> to vector<1x4xf32>
    %cst_21 = arith.constant dense<0.000000e+00> : vector<1xf32>
    %55 = vector.multi_reduction <add>, %54, %cst_21 [1] : vector<1x4xf32> to vector<1xf32>
    %56 = vector.shape_cast %55 : vector<1xf32> to vector<1x1xf32>
    %cst_22 = arith.constant 8.000000e+00 : f32
    %57 = vector.broadcast %cst_22 : f32 to vector<1x1xf32>
    %58 = arith.divf %56, %57 : vector<1x1xf32>
    %cst_23 = arith.constant 1.000000e+00 : f32
    %59 = vector.broadcast %cst_23 : f32 to vector<1x1xf32>
    %60 = arith.subf %59, %58 : vector<1x1xf32>
    %cst_24 = arith.constant 0.000000e+00 : f32
    %61 = vector.broadcast %cst_24 : f32 to vector<1x1xf32>
    %62 = arith.maximumf %60, %61 : vector<1x1xf32>
    %c0_25 = arith.constant 0 : index
    %c0_26 = arith.constant 0 : index
    %c0_27 = arith.constant 0 : index
    %63 = vector.load %arg3[%c0_25, %c0_26, %c0_27] : memref<6x8x32xf32, #tpu.memory_space<vmem>>, vector<6x8x32xf32>
    %64 = arith.mulf %63, %63 : vector<6x8x32xf32>
    %cst_28 = arith.constant dense<0.000000e+00> : vector<6x8xf32>
    %65 = vector.multi_reduction <add>, %64, %cst_28 [2] : vector<6x8x32xf32> to vector<6x8xf32>
    %66 = vector.shape_cast %65 : vector<6x8xf32> to vector<6x8x1xf32>
    %67 = math.rsqrt %66 : vector<6x8x1xf32>
    %68 = vector.broadcast %67 : vector<6x8x1xf32> to vector<6x8x32xf32>
    %69 = arith.mulf %63, %68 : vector<6x8x32xf32>
    %70 = vector.extract_strided_slice %69 {offsets = [0, 0, 0], sizes = [2, 8, 32], strides = [1, 1, 1]} : vector<6x8x32xf32> to vector<2x8x32xf32>
    %71 = vector.extract_strided_slice %69 {offsets = [2, 0, 0], sizes = [2, 8, 32], strides = [1, 1, 1]} : vector<6x8x32xf32> to vector<2x8x32xf32>
    %72 = vector.extract_strided_slice %69 {offsets = [4, 0, 0], sizes = [2, 8, 32], strides = [1, 1, 1]} : vector<6x8x32xf32> to vector<2x8x32xf32>
    %73 = arith.subf %71, %72 : vector<2x8x32xf32>
    %cst_29 = arith.constant dense<0.000000e+00> : vector<2x32xf32>
    %74 = vector.multi_reduction <add>, %73, %cst_29 [1] : vector<2x8x32xf32> to vector<2x32xf32>
    %75 = vector.shape_cast %74 : vector<2x32xf32> to vector<2x1x32xf32>
    %76 = vector.broadcast %75 : vector<2x1x32xf32> to vector<2x8x32xf32>
    %77 = arith.mulf %70, %76 : vector<2x8x32xf32>
    %cst_30 = arith.constant dense<0.000000e+00> : vector<2x8xf32>
    %78 = vector.multi_reduction <add>, %77, %cst_30 [2] : vector<2x8x32xf32> to vector<2x8xf32>
    %79 = vector.shape_cast %78 : vector<2x8xf32> to vector<2x8x1xf32>
    %cst_31 = arith.constant dense<0.000000e+00> : vector<2x1xf32>
    %80 = vector.multi_reduction <add>, %79, %cst_31 [1] : vector<2x8x1xf32> to vector<2x1xf32>
    %81 = vector.shape_cast %80 : vector<2x1xf32> to vector<2x1x1xf32>
    %cst_32 = arith.constant dense<0.000000e+00> : vector<1x1xf32>
    %82 = vector.multi_reduction <add>, %81, %cst_32 [0] : vector<2x1x1xf32> to vector<1x1xf32>
    %83 = vector.shape_cast %82 : vector<1x1xf32> to vector<1x1x1xf32>
    %84 = vector.shape_cast %83 : vector<1x1x1xf32> to vector<1x1xf32>
    %cst_33 = arith.constant 1.280000e+02 : f32
    %85 = vector.broadcast %cst_33 : f32 to vector<1x1xf32>
    %86 = arith.divf %84, %85 : vector<1x1xf32>
    %cst_34 = arith.constant 5.000000e-01 : f32
    %87 = vector.broadcast %cst_34 : f32 to vector<1x1xf32>
    %88 = arith.subf %87, %86 : vector<1x1xf32>
    %89 = math.absf %88 : vector<1x1xf32>
    %cst_35 = arith.constant 1.000000e-01 : f32
    %90 = vector.broadcast %cst_35 : f32 to vector<1x1xf32>
    %91 = arith.mulf %90, %62 : vector<1x1xf32>
    %92 = arith.addf %48, %91 : vector<1x1xf32>
    %cst_36 = arith.constant 1.000000e-01 : f32
    %93 = vector.broadcast %cst_36 : f32 to vector<1x1xf32>
    %94 = arith.mulf %93, %89 : vector<1x1xf32>
    %95 = arith.addf %92, %94 : vector<1x1xf32>
    %c0_37 = arith.constant 0 : index
    %c0_38 = arith.constant 0 : index
    %96 = vector.load %arg4[%c0_37, %c0_38] : memref<1x1xf32, #tpu.memory_space<vmem>>, vector<1x1xf32>
    tpu.vector_store %arg4[%c0_37, %c0_38], %95 {strides = array<i32>} : memref<1x1xf32, #tpu.memory_space<vmem>>, vector<1x1xf32>,
    return
  }
}

</mosaic_0001>

<llo_original>
// kernel: tpu_custom_call.1
$region0: #{tpu_custom_call.1}
  #allocation0 [shape = 'u32[]', space=smem, size = 0x4, offset = 0x4, fixed_abs, tag = 'smem constant byte address 0x4 - core index']
  #allocation1 [shape = 'u32[144,128]{1,0:T(1,128)}', space=vmem, size = 0x12000, scoped, tag = 'internal scratch']
  %s0 = inlined_call_operand.hbm [shape: f32[4,16], index: 0, kind: input, shape index: {}]
  %s1 = inlined_call_operand.hbm [shape: f32[4,16], index: 1, kind: input, shape index: {}]
  %s2 = inlined_call_operand.hbm [shape: f32[4,4], index: 2, kind: input, shape index: {}]
  %s3 = inlined_call_operand.hbm [shape: f32[6,8,32], index: 3, kind: input, shape index: {}]
  %s4 = inlined_call_operand.hbm [shape: f32[1,1], index: 4, kind: output, shape index: {}]
  %s5 = sld [smem:[#allocation0]]
  $region42: #{tpu_custom_call.1} parent=0
    _
  %s7 = ssub.s32 1, %s5
  %s8 = scalar_select 0, %s7, %s5
  $region1: #{tpu_custom_call.1} parent=0
    #allocation2 [shape = 'u8[2048]{0}', space=vmem, size = 0x800, scoped, tag = 'input window, operand 0, single buffered']
    #allocation3 [shape = 's32[1]{0}', space=sflag, size = 0x4, scoped, tag = 'scoped memory for tpu_custom_call.1']
    #allocation4 [shape = 's32[1]{0}', space=sflag, size = 0x4, scoped, tag = 'scoped memory for tpu_custom_call.1']
    #allocation5 [shape = 'u8[2048]{0}', space=vmem, size = 0x800, scoped, tag = 'input window, operand 1, single buffered']
    #allocation6 [shape = 's32[1]{0}', space=sflag, size = 0x4, scoped, tag = 'scoped memory for tpu_custom_call.1']
    #allocation7 [shape = 'u8[2048]{0}', space=vmem, size = 0x800, scoped, tag = 'input window, operand 2, single buffered']
    #allocation8 [shape = 'u8[24576]{0}', space=vmem, size = 0x6000, scoped, tag = 'input window, operand 3, single buffered']
    #allocation9 [shape = 's32[1]{0}', space=sflag, size = 0x4, scoped, tag = 'scoped memory for tpu_custom_call.1']
    #allocation10 [shape = 'u8[512]{0}', space=vmem, size = 0x400, scoped, tag = 'output window, operand 0, single buffered']
    %9 = vsyncpa [#allocation3], 0
    %10 = vsyncpa [#allocation6], 0
    %11 = vsyncpa [#allocation9], 0
    %12 = vsyncpa [#allocation4], 0
    // Predicated region
    $region2: #{tpu_custom_call.1} parent=1 // pred_check
      _
    $region3: #{tpu_custom_call.1} parent=1 // pred_check_branch
      %14 = sbr.rel (0) target = $region5
    $region4: #{tpu_custom_call.1} parent=1 // pred_region
      %s16 = ssub.s32 64, 64
      %17 = vsyncadd [#allocation3], %s16
      %s19 = sshll.u32 [#allocation2], 4
      %s20 = int_to_ptr.vmem [resolvable:$true] %s19
      %22 = dma.hbm_to_vmem [thread:$0]  %s0, 64, %s20, [#allocation3]
    $region5: #{tpu_custom_call.1} parent=1 // pred_fallthru
      _
    // Predicated region
    $region6: #{tpu_custom_call.1} parent=1 // pred_check
      _
    $region7: #{tpu_custom_call.1} parent=1 // pred_check_branch
      %24 = sbr.rel (0) target = $region9
    $region8: #{tpu_custom_call.1} parent=1 // pred_region
      %s26 = ssub.s32 64, 64
      %27 = vsyncadd [#allocation6], %s26
      %s29 = sshll.u32 [#allocation5], 4
      %s30 = int_to_ptr.vmem [resolvable:$true] %s29
      %32 = dma.hbm_to_vmem [thread:$0]  %s1, 64, %s30, [#allocation6]
    $region9: #{tpu_custom_call.1} parent=1 // pred_fallthru
      _
    // Predicated region
    $region10: #{tpu_custom_call.1} parent=1 // pred_check
      _
    $region11: #{tpu_custom_call.1} parent=1 // pred_check_branch
      %34 = sbr.rel (0) target = $region13
    $region12: #{tpu_custom_call.1} parent=1 // pred_region
      %s36 = ssub.s32 64, 64
      %37 = vsyncadd [#allocation6], %s36
      %s39 = sshll.u32 [#allocation7], 4
      %s40 = int_to_ptr.vmem [resolvable:$true] %s39
      %42 = dma.hbm_to_vmem [thread:$0]  %s2, 64, %s40, [#allocation6]
    $region13: #{tpu_custom_call.1} parent=1 // pred_fallthru
      _
    // Predicated region
    $region14: #{tpu_custom_call.1} parent=1 // pred_check
      _
    $region15: #{tpu_custom_call.1} parent=1 // pred_check_branch
      %44 = sbr.rel (0) target = $region17
    $region16: #{tpu_custom_call.1} parent=1 // pred_region
      %s46 = ssub.s32 768, 768
      %47 = vsyncadd [#allocation9], %s46
      %s48 = sshll.u32 [#allocation8], 4
      %s49 = int_to_ptr.vmem [resolvable:$true] %s48
      %54 = dma.hbm_to_vmem [thread:$0]  %s3, 768, %s49, [#allocation9], 128, 128, 8
    $region17: #{tpu_custom_call.1} parent=1 // pred_fallthru
      _
    // Predicated region
    $region18: #{tpu_custom_call.1} parent=1 // pred_check
      _
    $region19: #{tpu_custom_call.1} parent=1 // pred_check_branch
      %56 = sbr.rel (0) target = $region21
    $region20: #{tpu_custom_call.1} parent=1 // pred_region
      %57 = dma.done [#allocation3], 64
    $region21: #{tpu_custom_call.1} parent=1 // pred_fallthru
      _
    // Predicated region
    $region22: #{tpu_custom_call.1} parent=1 // pred_check
      _
    $region23: #{tpu_custom_call.1} parent=1 // pred_check_branch
      %59 = sbr.rel (0) target = $region25
    $region24: #{tpu_custom_call.1} parent=1 // pred_region
      %60 = dma.done [#allocation6], 64
    $region25: #{tpu_custom_call.1} parent=1 // pred_fallthru
      _
    // Predicated region
    $region26: #{tpu_custom_call.1} parent=1 // pred_check
      _
    $region27: #{tpu_custom_call.1} parent=1 // pred_check_branch
      %62 = sbr.rel (0) target = $region29
    $region28: #{tpu_custom_call.1} parent=1 // pred_region
      %63 = dma.done [#allocation6], 64
    $region29: #{tpu_custom_call.1} parent=1 // pred_fallthru
      _
    // Predicated region
    $region30: #{tpu_custom_call.1} parent=1 // pred_check
      _
    $region31: #{tpu_custom_call.1} parent=1 // pred_check_branch
      %65 = sbr.rel (0) target = $region33
    $region32: #{tpu_custom_call.1} parent=1 // pred_region
      %66 = dma.done [#allocation9], 768
    $region33: #{tpu_custom_call.1} parent=1 // pred_fallthru
      _
    %v67 = vld [vmem:[#allocation2] sm:$0xf]
    %v68 = vld [vmem:[#allocation5] sm:$0xf]
    %v69 = vmax.f32 %v68, 0.1
    %v70 = vmin.f32 %v69, 0.9
    %v71 = vmul.f32 %v70, -0.6
    %v72 = vadd.f32 %v67, 1e-08
    %v73 = vlog2.pop %v72
    %v74 = vmul.f32 %v73, 0.6931472
    %v75 = vmul.f32 %v71, %v74
    %v76 = vsub.f32 1.0, %v70
    %v77 = vmul.f32 %v76, 0.4
    %v78 = vsub.f32 1.0, %v67
    %v79 = vadd.f32 %v78, 1e-08
    %v80 = vlog2.pop %v79
    %v81 = vmul.f32 %v80, 0.6931472
    %v82 = vmul.f32 %v77, %v81
    %v83 = vsub.f32 %v75, %v82
    %v84 = vlaneseq
    %v85 = vshrl.u32 %v84, 7
    %v86 = vmul.f32 %v83, 0.015625
    %vm87 = vcmp.ge.s32.totalorder %v85, 2
    %v88 = vmul.f32 %v67, 0.0003125
    %v89 = vsel %vm87, %v88, 0.0
    %v90 = vadd.f32 %v86, %v89
    %vm91 = vcmask 125952
    %v92 = vsel %vm91, %v90, 0.0
    %v93 = vrot.slane %v92, 4
    %v94 = vadd.f32 %v92, %v93
    %v95 = vrot.slane %v94, 2
    %v96 = vadd.f32 %v94, %v95
    %v97 = vrot.slane %v96, 1
    %v98 = vadd.f32 %v96, %v97
    %vm99 = vcmask 130048
    %v100 = vsel %vm99, %v98, 0.0
    %101 = vadd.xlane.f32.xlu0 %v100
    %v102 = vpop.xlane.xlu0 %101
    %v104 = vrot.slane %v67, 7
    %v106 = vsub.f32 %v67, %v104
    %v107 = vmul.f32 %v106, %v106
    %v108 = vadd.f32 %v107, 0.0
    %vm109 = vcmask 125955
    %v110 = vsel %vm109, %v108, 0.0
    %111 = vadd.xlane.f32.xlu0 %v110
    %v112 = vpop.xlane.xlu0 %111
    %v113 = vmul.f32 %v112, 0.001
    %v114 = vadd.f32 %v102, %v113
    %v115 = vld [vmem:[#allocation7] sm:$0xf]
    %v117 = vrot.slane %v115, 6
    %v119 = vsub.f32 %v115, %v117
    %v121 = vrot.slane %v119, 2
    %vm123 = vcmask 25600
    %v124 = vsel %vm123, %v121, 0.0
    %v125 = vrot.slane %v124, 4
    %v126 = vadd.f32 %v124, %v125
    %v127 = vrot.slane %v126, 2
    %v128 = vadd.f32 %v126, %v127
    %v129 = vrot.slane %v128, 1
    %v130 = vadd.f32 %v128, %v129
    %vm131 = vcmask 31744
    %v132 = vsel %vm131, %v130, 0.0
    %133 = vadd.xlane.f32.xlu0 %v132
    %v134 = vpop.xlane.xlu0 %133
    %v135 = vrcp.pop 8.0
    %v136 = vmul.f32 %v134, %v135
    %v137 = vsub.f32 1.0, %v136
    %v138 = vmax.f32 %v137, 0.0
    %v139 = vld [vmem:[#allocation8] sm:$0xff]
    %v140 = vld [vmem:[#allocation8 + $0x8] sm:$0xff]
    %v141 = vld [vmem:[#allocation8 + $0x10] sm:$0xff]
    %v142 = vld [vmem:[#allocation8 + $0x18] sm:$0xff]
    %v143 = vld [vmem:[#allocation8 + $0x20] sm:$0xff]
    %v144 = vld [vmem:[#allocation8 + $0x28] sm:$0xff]
    %v145 = vmul.f32 %v139, %v139
    %v146 = vmul.f32 %v140, %v140
    %v147 = vmul.f32 %v141, %v141
    %v148 = vmul.f32 %v142, %v142
    %v149 = vmul.f32 %v143, %v143
    %v150 = vmul.f32 %v144, %v144
    %vm151 = vcmask 261120
    %v152 = vsel %vm151, %v145, 0.0
    %153 = vadd.xlane.f32.xlu0 %v152
    %v154 = vpop.xlane.xlu0 %153
    %v155 = vsel %vm151, %v146, 0.0
    %156 = vadd.xlane.f32.xlu0 %v155
    %v157 = vpop.xlane.xlu0 %156
    %v158 = vsel %vm151, %v147, 0.0
    %159 = vadd.xlane.f32.xlu0 %v158
    %v160 = vpop.xlane.xlu0 %159
    %v161 = vsel %vm151, %v148, 0.0
    %162 = vadd.xlane.f32.xlu0 %v161
    %v163 = vpop.xlane.xlu0 %162
    %v164 = vsel %vm151, %v149, 0.0
    %165 = vadd.xlane.f32.xlu0 %v164
    %v166 = vpop.xlane.xlu0 %165
    %v167 = vsel %vm151, %v150, 0.0
    %168 = vadd.xlane.f32.xlu0 %v167
    %v169 = vpop.xlane.xlu0 %168
    %v170 = vrsqrt.pop %v154
    %v171 = vrsqrt.pop %v157
    %v172 = vrsqrt.pop %v160
    %v173 = vrsqrt.pop %v163
    %v174 = vrsqrt.pop %v166
    %v175 = vrsqrt.pop %v169
    %v176 = vmul.f32 %v139, %v170
    %v177 = vmul.f32 %v140, %v171
    %v178 = vmul.f32 %v141, %v172
    %v179 = vmul.f32 %v142, %v173
    %v180 = vmul.f32 %v143, %v174
    %v181 = vmul.f32 %v144, %v175
    %v182 = vsub.f32 %v178, %v180
    %v183 = vsub.f32 %v179, %v181
    %v184 = vsel %vm151, %v182, 0.0
    %v185 = vrot.slane %v184, 4
    %v186 = vadd.f32 %v184, %v185
    %v187 = vrot.slane %v186, 2
    %v188 = vadd.f32 %v186, %v187
    %v189 = vrot.slane %v188, 1
    %v190 = vadd.f32 %v188, %v189
    %v191 = vsel %vm151, %v183, 0.0
    %v192 = vrot.slane %v191, 4
    %v193 = vadd.f32 %v191, %v192
    %v194 = vrot.slane %v193, 2
    %v195 = vadd.f32 %v193, %v194
    %v196 = vrot.slane %v195, 1
    %v197 = vadd.f32 %v195, %v196
    %v198 = vmul.f32 %v176, %v190
    %v199 = vmul.f32 %v177, %v197
    %v200 = vsel %vm151, %v198, 0.0
    %201 = vadd.xlane.f32.xlu0 %v200
    %v202 = vpop.xlane.xlu0 %201
    %v203 = vsel %vm151, %v199, 0.0
    %204 = vadd.xlane.f32.xlu0 %v203
    %v205 = vpop.xlane.xlu0 %204
    %v206 = vrot.slane %v202, 4
    %v207 = vadd.f32 %v202, %v206
    %v208 = vrot.slane %v207, 2
    %v209 = vadd.f32 %v207, %v208
    %v210 = vrot.slane %v209, 1
    %v211 = vadd.f32 %v209, %v210
    %v212 = vrot.slane %v205, 4
    %v213 = vadd.f32 %v205, %v212
    %v214 = vrot.slane %v213, 2
    %v215 = vadd.f32 %v213, %v214
    %v216 = vrot.slane %v215, 1
    %v217 = vadd.f32 %v215, %v216
    %v218 = vadd.f32 %v211, %v217
    %v219 = vrcp.pop 128.0
    %v220 = vmul.f32 %v218, %v219
    %v221 = vsub.f32 0.5, %v220
    %v222 = vand.u32 2147483647, %v221
    %v223 = vmul.f32 %v138, 0.1
    %v224 = vadd.f32 %v114, %v223
    %v225 = vmul.f32 %v222, 0.1
    %v226 = vadd.f32 %v224, %v225
    %vm227 = vcmask 3075
    %228 = vst.msk [vmem:[#allocation10 - $0x3] sm:$0x8] %vm227, %v226
    // Predicated region
    $region34: #{tpu_custom_call.1} parent=1 // pred_check
      _
    $region35: #{tpu_custom_call.1} parent=1 // pred_check_branch
      %230 = sbr.rel (0) target = $region37
    $region36: #{tpu_custom_call.1} parent=1 // pred_region
      %s232 = ssub.s32 16, 16
      %233 = vsyncadd [#allocation4], %s232
      %s235 = sshll.u32 [#allocation10], 4
      %s236 = int_to_ptr.vmem [resolvable:$true] %s235
      %238 = dma.vmem_to_hbm [thread:$0]  %s236, 16, %s4, [#allocation4]
    $region37: #{tpu_custom_call.1} parent=1 // pred_fallthru
      _
    // Predicated region
    $region38: #{tpu_custom_call.1} parent=1 // pred_check
      _
    $region39: #{tpu_custom_call.1} parent=1 // pred_check_branch
      %240 = sbr.rel (0) target = $region41
    $region40: #{tpu_custom_call.1} parent=1 // pred_region
      %241 = dma.done [#allocation4], 16
    $region41: #{tpu_custom_call.1} parent=1 // pred_fallthru
      _
    %242 = vsyncpa [#allocation3], 1
    %243 = vsyncpa [#allocation6], 1
    %244 = vsyncpa [#allocation9], 1
    %245 = vsyncpa [#allocation4], 1

</llo_original>
